<compile_context>
chip_gen: v7x
topology: tpu7x:2x2x1
jax: 0.10.0
libtpu: 0.0.40
codegen_flags: <defaults>
</compile_context>

<pallas_src>
import functools
import math

import numpy as np
import jax
import jax.numpy as jnp
from jax import lax
from jax.experimental import pallas as pl
from jax.experimental.pallas import tpu as pltpu


# --------------------------- generation-aware budgets -----------------------

def _vmem_capacity_bytes():
    try:
        info = pltpu.get_tpu_info()
        cap = getattr(info, "vmem_capacity_bytes", None)
        if cap:
            return int(cap)
    except Exception:
        pass
    return 64 * 1024 * 1024  # conservative default (v7x)


_VMEM_CAP = _vmem_capacity_bytes()
_BIG_VMEM = _VMEM_CAP >= 128 * 1024 * 1024
# Leave headroom for Mosaic-internal scratch / double buffering.
_VMEM_LIMIT_BYTES = max(32 * 1024 * 1024,
                        min((_VMEM_CAP * 3) // 4, 100 * 1024 * 1024))

# Lane (last) dim tiles must be multiples of 128 (or the full dim).
_MINOR_TILES = (1024, 512, 256, 128) if _BIG_VMEM else (512, 256, 128)
# Sublane (second-minor) dim tiles only need to be multiples of 8.
_MAJOR_TILES = _MINOR_TILES + (64, 32, 16, 8)


def _pick_tile(dim, candidates):
    """Largest candidate dividing `dim`; else the full dim (always legal)."""
    for c in candidates:
        if dim >= c and dim % c == 0:
            return c
    return dim


def _pick_tq(sq, sk, d_model, num_heads, in_isz, a_isz, h_isz):
    """Query tile: largest divisor of Sq whose per-step VMEM fits the budget."""
    budget = int(_VMEM_LIMIT_BYTES * 0.8)
    kv_bytes = 2 * 2 * sk * d_model * in_isz  # K,V blocks, double-buffered
    cands = [c for c in (1024, 512, 256, 128, 64, 32, 16, 8) if sq % c == 0]
    if not cands:
        cands = [sq]
    for tq in cands:
        per_step = (kv_bytes
                    + 2 * tq * d_model * (in_isz + h_isz)   # q + H, db
                    + 2 * num_heads * tq * sk * a_isz       # A out, db
                    + num_heads * tq * sk * 4               # f32 score/prob
                    + tq * d_model * 4)                     # concat temp
        if per_step <= budget:
            return tq
    return cands[-1]


# ------------------------------- Pallas kernels -----------------------------

def _linear_kernel(x_ref, w_ref, o_ref, acc_ref):
    # x: (tm, tk), w: (tk, tn), o: (tm, tn), acc: f32 (tm, tn)
    @pl.when(pl.program_id(2) == 0)
    def _():
        acc_ref[...] = jnp.zeros_like(acc_ref)

    acc_ref[...] += jnp.dot(x_ref[...], w_ref[...],
                            preferred_element_type=jnp.float32)

    @pl.when(pl.program_id(2) == pl.num_programs(2) - 1)
    def _():
        o_ref[...] = acc_ref[...].astype(o_ref.dtype)


def _linear_bias_kernel(x_ref, w_ref, b_ref, o_ref, acc_ref):
    # x: (tm, tk), w: (tk, tn), b: (1, tn) f32, o: (tm, tn), acc: f32 (tm, tn)
    @pl.when(pl.program_id(2) == 0)
    def _():
        acc_ref[...] = jnp.zeros_like(acc_ref)

    acc_ref[...] += jnp.dot(x_ref[...], w_ref[...],
                            preferred_element_type=jnp.float32)

    @pl.when(pl.program_id(2) == pl.num_programs(2) - 1)
    def _():
        o_ref[...] = (acc_ref[...] + b_ref[...]).astype(o_ref.dtype)


def _attn_kernel(q_ref, k_ref, v_ref, h_ref, a_ref, *,
                 num_heads, d_k, approx_recip, mxu_dtype):
    # q: (1, tq, d_model), k/v: (1, Sk, d_model)
    # h: (1, tq, d_model)  -- lane-dense, all heads concatenated
    # a: (1, num_heads, tq, Sk)
    q = q_ref[0]
    k = k_ref[0]
    v = v_ref[0]
    h_parts = []
    for h in range(num_heads):
        lo = h * d_k
        qh = q[:, lo:lo + d_k].astype(mxu_dtype)
        kh = k[:, lo:lo + d_k].astype(mxu_dtype)
        vh = v[:, lo:lo + d_k].astype(mxu_dtype)
        # Contract the last dims of both operands: the K "transpose" is
        # absorbed by the MXU, no XLU transpose / VMEM copy of the K tile.
        s = lax.dot_general(qh, kh, (((1,), (1,)), ((), ())),
                            preferred_element_type=jnp.float32)   # (tq, Sk)
        m = jnp.max(s, axis=-1, keepdims=True)
        e = jnp.exp(s - m)
        p = e * pl.reciprocal(jnp.sum(e, axis=-1, keepdims=True),
                              approx=approx_recip)
        a_ref[0, h] = p.astype(a_ref.dtype)
        h_parts.append(jnp.dot(p.astype(mxu_dtype), vh,
                               preferred_element_type=jnp.float32))
    h_ref[0] = jnp.concatenate(h_parts, axis=-1).astype(h_ref.dtype)


# --------------------------------- wrappers ---------------------------------

def pallas_linear(x2d, w, b=None, *, compute_dtype=jnp.float32,
                  out_dtype=jnp.float32):
    """Tiled y = x @ w (+ b).  x2d: (M, K), w: (K, N), b: optional (N,)."""
    m, k_dim = x2d.shape
    k_dim2, n = w.shape
    assert k_dim == k_dim2

    x2d = x2d.astype(compute_dtype)
    w = w.astype(compute_dtype)

    tm = _pick_tile(m, _MAJOR_TILES)
    tn = _pick_tile(n, _MINOR_TILES)
    tk = _pick_tile(k_dim, _MINOR_TILES)
    grid = (m // tm, n // tn, k_dim // tk)

    in_specs = [pl.BlockSpec((tm, tk), lambda i, j, k: (i, k)),
                pl.BlockSpec((tk, tn), lambda i, j, k: (k, j))]
    args = [x2d, w]
    kernel = _linear_kernel
    if b is not None:
        b2d = b.reshape(1, n).astype(jnp.float32)
        in_specs.append(pl.BlockSpec((1, tn), lambda i, j, k: (0, j)))
        args.append(b2d)
        kernel = _linear_bias_kernel

    bytes_accessed = (x2d.size * x2d.dtype.itemsize
                      + w.size * w.dtype.itemsize
                      + m * n * np.dtype(out_dtype).itemsize)
    cost = pl.CostEstimate(flops=2 * m * n * k_dim, transcendentals=0,
                           bytes_accessed=int(bytes_accessed))

    return pl.pallas_call(
        kernel,
        out_shape=jax.ShapeDtypeStruct((m, n), out_dtype),
        grid=grid,
        in_specs=in_specs,
        out_specs=pl.BlockSpec((tm, tn), lambda i, j, k: (i, j)),
        scratch_shapes=[pltpu.VMEM((tm, tn), jnp.float32)],
        compiler_params=pltpu.CompilerParams(
            dimension_semantics=("parallel", "parallel", "arbitrary"),
            vmem_limit_bytes=_VMEM_LIMIT_BYTES),
        cost_estimate=cost,
    )(*args)


def _q_map(col):
    return lambda b, qi: (b, qi, col)


def _kv_map(col):
    return lambda b, qi: (b, 0, col)


def _out_h_map(b, qi):
    return (b, qi, 0)


def _out_a_map(b, qi):
    return (b, 0, qi, 0)


def pallas_attention(q, k, v, *, num_heads, d_model,
                     q_col=0, k_col=0, v_col=0,
                     compute_dtype=jnp.float32, a_dtype=jnp.float32):
    """All-heads attention.

    q: (B, Sq, Cq), k/v: (B, Sk, Ck/Cv); the kernel reads the d_model-wide
    window at block column {q,k,v}_col of the last dim, so q/k/v may all be
    the SAME fused (B, S, 3*d_model) QKV projection output (zero-copy).
    Returns H: (B, Sq, d_model) lane-dense and A: (B, num_heads, Sq, Sk).
    1/sqrt(d_k) is already folded into W_q upstream.
    """
    B, Sq, _ = q.shape
    Sk = k.shape[1]
    d_k = d_model // num_heads

    q = q.astype(compute_dtype)
    k = k.astype(compute_dtype)
    v = v.astype(compute_dtype)
    h_dtype = compute_dtype

    in_isz = np.dtype(compute_dtype).itemsize
    a_isz = np.dtype(a_dtype).itemsize
    tq = _pick_tq(Sq, Sk, d_model, num_heads, in_isz, a_isz,
                  np.dtype(h_dtype).itemsize)
    grid = (B, Sq // tq)

    kern = functools.partial(
        _attn_kernel, num_heads=num_heads, d_k=d_k,
        approx_recip=(compute_dtype != jnp.float32),
        mxu_dtype=compute_dtype)

    cost = pl.CostEstimate(
        flops=4 * B * num_heads * Sq * Sk * d_k,
        transcendentals=B * num_heads * Sq * Sk,
        bytes_accessed=int((B * Sq * d_model + 2 * B * Sk * d_model) * in_isz
                           + B * Sq * d_model * np.dtype(h_dtype).itemsize
                           + B * num_heads * Sq * Sk * a_isz))

    return pl.pallas_call(
        kern,
        out_shape=(jax.ShapeDtypeStruct((B, Sq, d_model), h_dtype),
                   jax.ShapeDtypeStruct((B, num_heads, Sq, Sk), a_dtype)),
        grid=grid,
        in_specs=[pl.BlockSpec((1, tq, d_model), _q_map(q_col)),
                  pl.BlockSpec((1, Sk, d_model), _kv_map(k_col)),
                  pl.BlockSpec((1, Sk, d_model), _kv_map(v_col))],
        out_specs=(pl.BlockSpec((1, tq, d_model), _out_h_map),
                   pl.BlockSpec((1, num_heads, tq, Sk), _out_a_map)),
        compiler_params=pltpu.CompilerParams(
            # Keep the megacore split on the batch axis so K/V stay resident
            # across query tiles on each TensorCore (v7x).
            dimension_semantics=("parallel", "arbitrary"),
            vmem_limit_bytes=_VMEM_LIMIT_BYTES),
        cost_estimate=cost,
    )(q, k, v)


# ---------------------------------- module ----------------------------------

class MultiHeadAttentionPallas:
    """Inference-mode equivalent of the PyTorch MultiHeadAttention module."""

    def __init__(self, d_model, num_heads, dropout, d_input=None, key=None,
                 compute_dtype=jnp.float32, a_dtype=jnp.float32):
        assert d_model % num_heads == 0
        self.num_heads = num_heads
        self.d_model = d_model
        self.d_k = d_model // num_heads
        self.scale = 1.0 / math.sqrt(self.d_k)
        self.compute_dtype = compute_dtype
        self.a_dtype = a_dtype
        self.dropout_p = dropout
        if d_input is None:
            d_xq = d_xk = d_xv = d_model
        else:
            d_xq, d_xk, d_xv = d_input
        key = jax.random.PRNGKey(42) if key is None else key
        ks = jax.random.split(key, 5)
        # Weights stored already transposed: (d_in, d_out), so y = x @ W.
        self.w_q = 0.02 * jax.random.normal(ks[0], (d_xq, d_model), jnp.float32)
        self.w_k = 0.02 * jax.random.normal(ks[1], (d_xk, d_model), jnp.float32)
        self.w_v = 0.02 * jax.random.normal(ks[2], (d_xv, d_model), jnp.float32)
        self.w_h = 0.02 * jax.random.normal(ks[3], (d_model, d_model), jnp.float32)
        self.b_h = 0.02 * jax.random.normal(ks[4], (d_model,), jnp.float32)
        # 1/sqrt(d_k) folded into W_q (free).  Q|K|V fused along d_out for the
        # self-attention fast path (X read once, 3x wider MXU N).
        self.w_q_scaled = self.w_q * self.scale
        if d_xq == d_xk == d_xv:
            self.w_qkv = jnp.concatenate(
                [self.w_q_scaled, self.w_k, self.w_v], axis=1)
        else:
            self.w_qkv = None

    def __call__(self, X_q, X_k, X_v):
        B, Sq, _ = X_q.shape
        Sk = X_k.shape[1]
        cd = self.compute_dtype
        dm = self.d_model

        if (X_q is X_k) and (X_k is X_v) and self.w_qkv is not None:
            # Self-attention fast path: one fused QKV projection.
            qkv = pallas_linear(X_q.reshape(B * Sq, -1), self.w_qkv,
                                compute_dtype=cd, out_dtype=cd)
            qkv3 = qkv.reshape(B, Sq, 3 * dm)
            if dm % 128 == 0:
                # Zero-copy: the attention BlockSpecs read the Q/K/V windows
                # straight out of the fused projection (no split, no copies).
                H3, A = pallas_attention(
                    qkv3, qkv3, qkv3, num_heads=self.num_heads, d_model=dm,
                    q_col=0, k_col=1, v_col=2,
                    compute_dtype=cd, a_dtype=self.a_dtype)
            else:
                # Sub-128 d_model cannot window the fused last dim legally;
                # fall back to slicing (only hit at toy sizes).
                q3 = qkv3[..., :dm]
                k3 = qkv3[..., dm:2 * dm]
                v3 = qkv3[..., 2 * dm:]
                H3, A = pallas_attention(
                    q3, k3, v3, num_heads=self.num_heads, d_model=dm,
                    compute_dtype=cd, a_dtype=self.a_dtype)
        else:
            q3 = pallas_linear(X_q.reshape(B * Sq, -1), self.w_q_scaled,
                               compute_dtype=cd,
                               out_dtype=cd).reshape(B, Sq, dm)
            k3 = pallas_linear(X_k.reshape(B * Sk, -1), self.w_k,
                               compute_dtype=cd,
                               out_dtype=cd).reshape(B, Sk, dm)
            v3 = pallas_linear(X_v.reshape(B * Sk, -1), self.w_v,
                               compute_dtype=cd,
                               out_dtype=cd).reshape(B, Sk, dm)
            H3, A = pallas_attention(
                q3, k3, v3, num_heads=self.num_heads, d_model=dm,
                compute_dtype=cd, a_dtype=self.a_dtype)

        # TODO(synk): dropout(A) skipped (eval-mode identity).
        H = pallas_linear(H3.reshape(B * Sq, dm), self.w_h, self.b_h,
                          compute_dtype=cd,
                          out_dtype=jnp.float32).reshape(B, Sq, dm)
        return H, A


# ---------------------------- reference (pure JAX) ---------------------------

def reference_forward(mha, X_q, X_k, X_v):
    q = X_q @ mha.w_q
    k = X_k @ mha.w_k
    v = X_v @ mha.w_v
    B, Sq, _ = q.shape
    Sk = k.shape[1]
    H, Dk = mha.num_heads, mha.d_k
    qh = q.reshape(B, Sq, H, Dk).transpose(0, 2, 1, 3)
    kh = k.reshape(B, Sk, H, Dk).transpose(0, 2, 1, 3)
    vh = v.reshape(B, Sk, H, Dk).transpose(0, 2, 1, 3)
    scores = jnp.einsum("bhqd,bhkd->bhqk", qh / math.sqrt(Dk), kh)
    A = jax.nn.softmax(scores, axis=-1)
    Hh = jnp.einsum("bhqk,bhkd->bhqd", A, vh)
    Hcat = Hh.transpose(0, 2, 1, 3).reshape(B, Sq, H * Dk)
    return Hcat @ mha.w_h + mha.b_h, A


# ------------------------------------ main -----------------------------------

if __name__ == "__main__":
    d_model, num_heads, dropout = 32, 4, 0.1
    batch, seq = 2, 8

    key = jax.random.PRNGKey(0)
    kq, kk, kv, kw = jax.random.split(key, 4)
    X_q = jax.random.normal(kq, (batch, seq, d_model), jnp.float32)
    X_k = jax.random.normal(kk, (batch, seq, d_model), jnp.float32)
    X_v = jax.random.normal(kv, (batch, seq, d_model), jnp.float32)

    # f32 path, cross attention (separate Q/K/V projection kernels).
    mha = MultiHeadAttentionPallas(d_model, num_heads, dropout, key=kw)
    H, A = mha(X_q, X_k, X_v)
    jax.block_until_ready((H, A))

    H_ref, A_ref = reference_forward(mha, X_q, X_k, X_v)
    assert H.shape == (batch, seq, d_model)
    assert A.shape == (batch, num_heads, seq, seq)
    assert jnp.allclose(H, H_ref, atol=2e-4, rtol=2e-4)
    assert jnp.allclose(A, A_ref, atol=1e-4, rtol=1e-4)

    # f32 path, self attention (fused QKV projection; split fallback d_model<128).
    H_sa, A_sa = mha(X_q, X_q, X_q)
    jax.block_until_ready((H_sa, A_sa))
    H_sa_ref, A_sa_ref = reference_forward(mha, X_q, X_q, X_q)
    assert jnp.allclose(H_sa, H_sa_ref, atol=2e-4, rtol=2e-4)
    assert jnp.allclose(A_sa, A_sa_ref, atol=1e-4, rtol=1e-4)

    # 128-aligned self attention: exercises the zero-copy fused Q/K/V read and
    # the lane-dense H output path.
    d_model2, num_heads2 = 128, 2
    X2 = jax.random.normal(jax.random.PRNGKey(1), (1, 8, d_model2), jnp.float32)
    mha2 = MultiHeadAttentionPallas(d_model2, num_heads2, dropout,
                                    key=jax.random.PRNGKey(2))
    H2, A2 = mha2(X2, X2, X2)
    jax.block_until_ready((H2, A2))
    H2_ref, A2_ref = reference_forward(mha2, X2, X2, X2)
    assert H2.shape == (1, 8, d_model2)
    assert A2.shape == (1, num_heads2, 8, 8)
    assert jnp.allclose(H2, H2_ref, atol=3e-4, rtol=3e-4)
    assert jnp.allclose(A2, A2_ref, atol=1e-4, rtol=1e-4)

    # bf16 MXU-operand path with bf16 A writeback (f32 accumulation), loose tol.
    mha_bf16 = MultiHeadAttentionPallas(d_model, num_heads, dropout, key=kw,
                                        compute_dtype=jnp.bfloat16,
                                        a_dtype=jnp.bfloat16)
    H_bf, A_bf = mha_bf16(X_q, X_k, X_v)
    jax.block_until_ready((H_bf, A_bf))
    assert jnp.allclose(H_bf, H_ref, atol=5e-2, rtol=5e-2)
    assert jnp.allclose(A_bf.astype(jnp.float32), A_ref, atol=2e-2, rtol=2e-2)

    print("KERNEL_OK")
</pallas_src>

<mosaic_0001>
module attributes {stable_mosaic.version = 11 : i64} {
  func.func @_linear_kernel(%arg0: i32, %arg1: i32, %arg2: i32, %arg3: memref<16x32xf32, #tpu.memory_space<vmem>>, %arg4: memref<32x32xf32, #tpu.memory_space<vmem>>, %arg5: memref<16x32xf32, #tpu.memory_space<vmem>>, %arg6: memref<16x32xf32, #tpu.memory_space<vmem>>) attributes {dimension_semantics = [#tpu.dimension_semantics<parallel>, #tpu.dimension_semantics<parallel>, #tpu.dimension_semantics<arbitrary>], iteration_bounds = array<i64: 1, 1, 1>, scalar_prefetch = 0 : i64, scratch_operands = 1 : i64, tpu.core_type = #tpu.core_type<tc>, window_params = [{transform_indices = @transform_0, window_bounds = array<i64: 16, 32>}, {transform_indices = @transform_1, window_bounds = array<i64: 32, 32>}, {transform_indices = @transform_2, window_bounds = array<i64: 16, 32>}]} {
    %c0_i32 = arith.constant 0 : i32
    %0 = arith.cmpi eq, %arg2, %c0_i32 : i32
    %1 = arith.extui %0 : i1 to i32
    %c0_i32_0 = arith.constant 0 : i32
    %2 = arith.cmpi ne, %1, %c0_i32_0 : i32
    scf.if %2 {
      %cst_10 = arith.constant 0.000000e+00 : f32
      %12 = vector.broadcast %cst_10 : f32 to vector<16x32xf32>
      %c0_11 = arith.constant 0 : index
      %c0_12 = arith.constant 0 : index
      %13 = vector.load %arg6[%c0_11, %c0_12] : memref<16x32xf32, #tpu.memory_space<vmem>>, vector<16x32xf32>
      tpu.vector_store %arg6[%c0_11, %c0_12], %12 {strides = array<i32>} : memref<16x32xf32, #tpu.memory_space<vmem>>, vector<16x32xf32>,
    } else {
    }
    %c0 = arith.constant 0 : index
    %c0_1 = arith.constant 0 : index
    %3 = vector.load %arg6[%c0, %c0_1] : memref<16x32xf32, #tpu.memory_space<vmem>>, vector<16x32xf32>
    %c0_2 = arith.constant 0 : index
    %c0_3 = arith.constant 0 : index
    %4 = vector.load %arg3[%c0_2, %c0_3] : memref<16x32xf32, #tpu.memory_space<vmem>>, vector<16x32xf32>
    %c0_4 = arith.constant 0 : index
    %c0_5 = arith.constant 0 : index
    %5 = vector.load %arg4[%c0_4, %c0_5] : memref<32x32xf32, #tpu.memory_space<vmem>>, vector<32x32xf32>
    %cst = arith.constant dense<0.000000e+00> : vector<16x32xf32>
    %6 = tpu.matmul %4, %5, %cst {dimension_numbers = #tpu.dot_dimension_numbers<[1], [0], [0], [1], [0, 0, 1, 1], [], []>} : vector<16x32xf32>, vector<32x32xf32>, vector<16x32xf32> -> vector<16x32xf32>
    %7 = arith.addf %3, %6 : vector<16x32xf32>
    %c0_6 = arith.constant 0 : index
    %c0_7 = arith.constant 0 : index
    %8 = vector.load %arg6[%c0_6, %c0_7] : memref<16x32xf32, #tpu.memory_space<vmem>>, vector<16x32xf32>
    tpu.vector_store %arg6[%c0_6, %c0_7], %7 {strides = array<i32>} : memref<16x32xf32, #tpu.memory_space<vmem>>, vector<16x32xf32>,
    %c0_i32_8 = arith.constant 0 : i32
    %9 = arith.cmpi eq, %arg2, %c0_i32_8 : i32
    %10 = arith.extui %9 : i1 to i32
    %c0_i32_9 = arith.constant 0 : i32
    %11 = arith.cmpi ne, %10, %c0_i32_9 : i32
    scf.if %11 {
      %c0_10 = arith.constant 0 : index
      %c0_11 = arith.constant 0 : index
      %12 = vector.load %arg6[%c0_10, %c0_11] : memref<16x32xf32, #tpu.memory_space<vmem>>, vector<16x32xf32>
      %c0_12 = arith.constant 0 : index
      %c0_13 = arith.constant 0 : index
      %13 = vector.load %arg5[%c0_12, %c0_13] : memref<16x32xf32, #tpu.memory_space<vmem>>, vector<16x32xf32>
      tpu.vector_store %arg5[%c0_12, %c0_13], %12 {strides = array<i32>} : memref<16x32xf32, #tpu.memory_space<vmem>>, vector<16x32xf32>,
    } else {
    }
    return
  }
  func.func @transform_0(%arg0: i32, %arg1: i32, %arg2: i32) -> (i32, i32) {
    %c0_i32 = arith.constant 0 : i32
    return %arg0, %arg2 : i32, i32
  }
  func.func @transform_1(%arg0: i32, %arg1: i32, %arg2: i32) -> (i32, i32) {
    %c0_i32 = arith.constant 0 : i32
    return %arg2, %arg1 : i32, i32
  }
  func.func @transform_2(%arg0: i32, %arg1: i32, %arg2: i32) -> (i32, i32) {
    %c0_i32 = arith.constant 0 : i32
    return %arg0, %arg1 : i32, i32
  }
}

</mosaic_0001>

<llo_original>
// kernel: tpu_custom_call.1
$region0: #{tpu_custom_call.1}
  #allocation0 [shape = 'u32[]', space=smem, size = 0x4, offset = 0x4, fixed_abs, tag = 'smem constant byte address 0x4 - core index']
  #allocation1 [shape = 'u32[144,128]{1,0:T(1,128)}', space=vmem, size = 0x12000, scoped, tag = 'internal scratch']
  #allocation2 [shape = 'f32[16,32]{1,0:T(8,128)}', space=vmem, size = 0x2000, scoped, tag = 'scratch operand']
  %s0 = inlined_call_operand.hbm [shape: f32[16,32], index: 0, kind: input, shape index: {}]
  %s1 = inlined_call_operand.hbm [shape: f32[32,32], index: 1, kind: input, shape index: {}]
  %s2 = inlined_call_operand.hbm [shape: f32[16,32], index: 2, kind: output, shape index: {}]
  %s3 = sld [smem:[#allocation0]]
  $region34: #{tpu_custom_call.1} parent=0
    _
  %s5 = ssub.s32 1, %s3
  %s6 = scalar_select 0, %s5, %s3
  $region1: #{tpu_custom_call.1} parent=0
    #allocation3 [shape = 'u8[8192]{0}', space=vmem, size = 0x2000, scoped, tag = 'input window, operand 0, single buffered']
    #allocation4 [shape = 's32[1]{0}', space=sflag, size = 0x4, scoped, tag = 'scoped memory for tpu_custom_call.1']
    #allocation5 [shape = 's32[1]{0}', space=sflag, size = 0x4, scoped, tag = 'scoped memory for tpu_custom_call.1']
    #allocation6 [shape = 'u8[16384]{0}', space=vmem, size = 0x4000, scoped, tag = 'input window, operand 1, single buffered']
    #allocation7 [shape = 's32[1]{0}', space=sflag, size = 0x4, scoped, tag = 'scoped memory for tpu_custom_call.1']
    #allocation8 [shape = 'u8[8192]{0}', space=vmem, size = 0x2000, scoped, tag = 'output window, operand 0, single buffered']
    %7 = vsyncpa [#allocation4], 0
    %8 = vsyncpa [#allocation7], 0
    %9 = vsyncpa [#allocation5], 0
    // Predicated region
    $region2: #{tpu_custom_call.1} parent=1 // pred_check
      _
    $region3: #{tpu_custom_call.1} parent=1 // pred_check_branch
      %11 = sbr.rel (0) target = $region5
    $region4: #{tpu_custom_call.1} parent=1 // pred_region
      %s13 = ssub.s32 256, 256
      %14 = vsyncadd [#allocation4], %s13
      %s15 = sshll.u32 [#allocation3], 4
      %s16 = int_to_ptr.vmem [resolvable:$true] %s15
      %21 = dma.hbm_to_vmem [thread:$0]  %s0, 256, %s16, [#allocation4], 128, 128, 8
    $region5: #{tpu_custom_call.1} parent=1 // pred_fallthru
      _
    // Predicated region
    $region6: #{tpu_custom_call.1} parent=1 // pred_check
      _
    $region7: #{tpu_custom_call.1} parent=1 // pred_check_branch
      %23 = sbr.rel (0) target = $region9
    $region8: #{tpu_custom_call.1} parent=1 // pred_region
      %s25 = ssub.s32 512, 512
      %26 = vsyncadd [#allocation7], %s25
      %s27 = sshll.u32 [#allocation6], 4
      %s28 = int_to_ptr.vmem [resolvable:$true] %s27
      %33 = dma.hbm_to_vmem [thread:$0]  %s1, 512, %s28, [#allocation7], 128, 128, 8
    $region9: #{tpu_custom_call.1} parent=1 // pred_fallthru
      _
    // Predicated region
    $region10: #{tpu_custom_call.1} parent=1 // pred_check
      _
    $region11: #{tpu_custom_call.1} parent=1 // pred_check_branch
      %35 = sbr.rel (0) target = $region13
    $region12: #{tpu_custom_call.1} parent=1 // pred_region
      %36 = dma.done [#allocation4], 256
    $region13: #{tpu_custom_call.1} parent=1 // pred_fallthru
      _
    // Predicated region
    $region14: #{tpu_custom_call.1} parent=1 // pred_check
      _
    $region15: #{tpu_custom_call.1} parent=1 // pred_check_branch
      %38 = sbr.rel (0) target = $region17
    $region16: #{tpu_custom_call.1} parent=1 // pred_region
      %39 = dma.done [#allocation7], 512
    $region17: #{tpu_custom_call.1} parent=1 // pred_fallthru
      _
    %p40 = scmp.eq.s32.totalorder 0, 0
    // Predicated region
    $region18: #{tpu_custom_call.1} parent=1 // pred_check
      %p41 = pneg %p40
    $region19: #{tpu_custom_call.1} parent=1 // pred_check_branch
      %43 = sbr.rel (%p41) target = $region21
    $region20: #{tpu_custom_call.1} parent=1 // pred_region
      %vm44 = vcmask 261120
      %45 = vst.msk [vmem:[#allocation2] sm:$0xff] %vm44, 0.0
      %46 = vst.msk [vmem:[#allocation2 + $0x8] sm:$0xff] %vm44, 0.0
    $region21: #{tpu_custom_call.1} parent=1 // pred_fallthru
      _
    %v47 = vld [vmem:[#allocation2] sm:$0xff]
    %v48 = vld [vmem:[#allocation2 + $0x8] sm:$0xff]
    %v49 = vld [vmem:[#allocation3] sm:$0xff]
    %v50 = vld [vmem:[#allocation3 + $0x8] sm:$0xff]
    %v51 = vld [vmem:[#allocation6] sm:$0xff]
    %v52 = vld [vmem:[#allocation6 + $0x8] sm:$0xff]
    %v53 = vld [vmem:[#allocation6 + $0x10] sm:$0xff]
    %v54 = vld [vmem:[#allocation6 + $0x18] sm:$0xff]
    %vm55 = vcmask 261120
    %v57 = vsel %vm55, %v49, 0
    %v60 = vsel %vm55, %v50, 0
    %62 = vmatprep.subr.mxu0 0.0
    %63 = vmatpush1.msra.mxu0 %v51
    %64 = vmatprep.subr.mxu0 0.0
    %65 = vmatpush1.msra.mxu0 %v52
    %66 = vmatprep.subr.mxu0 0.0
    %67 = vmatpush1.msra.mxu0 %v53
    %68 = vmatprep.subr.mxu0 0.0
    %69 = vmatpush1.msra.mxu0 %v54
    %70 = vmatprep.subr.mxu0 0.0
    %71 = vmatpush1.msra.mxu0 0.0
    %72 = vmatprep.subr.mxu0 0.0
    %73 = vmatpush1.msra.mxu0 0.0
    %74 = vmatprep.subr.mxu0 0.0
    %75 = vmatpush1.msra.mxu0 0.0
    %76 = vmatprep.subr.mxu0 0.0
    %77 = vmatpush1.msra.mxu0 0.0
    %78 = vmatprep.subr.mxu0 0.0
    %79 = vmatpush1.msra.mxu0 0.0
    %80 = vmatprep.subr.mxu0 0.0
    %81 = vmatpush1.msra.mxu0 0.0
    %82 = vmatprep.subr.mxu0 0.0
    %83 = vmatpush1.msra.mxu0 0.0
    %84 = vmatprep.subr.mxu0 0.0
    %85 = vmatpush1.msra.mxu0 0.0
    %86 = vmatprep.subr.mxu0 0.0
    %87 = vmatpush1.msra.mxu0 0.0
    %88 = vmatprep.subr.mxu0 0.0
    %89 = vmatpush1.msra.mxu0 0.0
    %90 = vmatprep.subr.mxu0 0.0
    %91 = vmatpush1.msra.mxu0 0.0
    %92 = vmatprep.subr.mxu0 0.0
    %93 = vmatpush1.msra.mxu0 0.0
    %94 = vmatprep.subr.mxu0 0.0
    %95 = vmatpush1.msra.mxu0 0.0
    %96 = vmatprep.subr.mxu0 0.0
    %97 = vmatpush1.msra.mxu0 0.0
    %98 = vmatprep.subr.mxu0 0.0
    %99 = vmatpush1.msra.mxu0 0.0
    %100 = vmatprep.subr.mxu0 0.0
    %101 = vmatpush1.msra.mxu0 0.0
    %102 = vmatprep.subr.mxu0 0.0
    %103 = vmatpush1.msra.mxu0 0.0
    %104 = vmatprep.subr.mxu0 0.0
    %105 = vmatpush1.msra.mxu0 0.0
    %106 = vmatprep.subr.mxu0 0.0
    %107 = vmatpush1.msra.mxu0 0.0
    %108 = vmatprep.subr.mxu0 0.0
    %109 = vmatpush1.msra.mxu0 0.0
    %110 = vmatprep.subr.mxu0 0.0
    %111 = vmatpush1.msra.mxu0 0.0
    %112 = vmatprep.subr.mxu0 0.0
    %113 = vmatpush1.msra.mxu0 0.0
    %114 = vmatprep.subr.mxu0 0.0
    %115 = vmatpush1.msra.mxu0 0.0
    %116 = vmatprep.subr.mxu0 0.0
    %117 = vmatpush1.msra.mxu0 0.0
    %118 = vmatprep.subr.mxu0 0.0
    %119 = vmatpush1.msra.mxu0 0.0
    %120 = vmatprep.subr.mxu0 0.0
    %121 = vmatpush1.msra.mxu0 0.0
    %122 = vmatprep.subr.mxu0 0.0
    %123 = vmatpush1.msra.mxu0 0.0
    %124 = vmatprep.subr.mxu0 0.0
    %125 = vmatpush1.msra.mxu0 0.0
    %126 = vmatprep.mubr.f32.mxu0 0.0
    %127 = vmatmul.mubr.f32.gmra.mrb[0].mxu0 %v57
    %v128 = vpop.f32.mrb[0].mxu0
    %v129 = vadd.f32 0.0, %v128
    %v130 = vpop.f32.mrb[0].mxu0
    %131 = vmatprep.mubr.f32.mxu0 0.0
    %132 = vmatmul.mubr.f32.gmra.mrb[0].mxu0 %v60
    %v133 = vpop.f32.mrb[0].mxu0
    %v134 = vadd.f32 0.0, %v133
    %v135 = vpop.f32.mrb[0].mxu0
    %136 = vdwg.mxu0
    %v137 = vadd.f32 %v47, %v129
    %v138 = vadd.f32 %v48, %v134
    %139 = vst.msk [vmem:[#allocation2] sm:$0xff] %vm55, %v137
    %140 = vst.msk [vmem:[#allocation2 + $0x8] sm:$0xff] %vm55, %v138
    // Predicated region
    $region22: #{tpu_custom_call.1} parent=1 // pred_check
      %p141 = pneg %p40
    $region23: #{tpu_custom_call.1} parent=1 // pred_check_branch
      %143 = sbr.rel (%p141) target = $region25
    $region24: #{tpu_custom_call.1} parent=1 // pred_region
      %v144 = vld [vmem:[#allocation2] sm:$0xff]
      %v145 = vld [vmem:[#allocation2 + $0x8] sm:$0xff]
      %146 = vst.msk [vmem:[#allocation8] sm:$0xff] %vm55, %v144
      %147 = vst.msk [vmem:[#allocation8 + $0x8] sm:$0xff] %vm55, %v145
    $region25: #{tpu_custom_call.1} parent=1 // pred_fallthru
      _
    // Predicated region
    $region26: #{tpu_custom_call.1} parent=1 // pred_check
      _
    $region27: #{tpu_custom_call.1} parent=1 // pred_check_branch
      %149 = sbr.rel (0) target = $region29
    $region28: #{tpu_custom_call.1} parent=1 // pred_region
      %s151 = ssub.s32 256, 256
      %152 = vsyncadd [#allocation5], %s151
      %s153 = sshll.u32 [#allocation8], 4
      %s154 = int_to_ptr.vmem [resolvable:$true] %s153
      %159 = dma.vmem_to_hbm [thread:$0]  %s154, 256, %s2, [#allocation5], 128, 128, 8
    $region29: #{tpu_custom_call.1} parent=1 // pred_fallthru
      _
    // Predicated region
    $region30: #{tpu_custom_call.1} parent=1 // pred_check
      _
    $region31: #{tpu_custom_call.1} parent=1 // pred_check_branch
      %161 = sbr.rel (0) target = $region33
    $region32: #{tpu_custom_call.1} parent=1 // pred_region
      %162 = dma.done [#allocation5], 256
    $region33: #{tpu_custom_call.1} parent=1 // pred_fallthru
      _
    %163 = vsyncpa [#allocation4], 1
    %164 = vsyncpa [#allocation7], 1
    %165 = vsyncpa [#allocation5], 1

</llo_original>
